<compile_context>
chip_gen: v7x
topology: tpu7x:2x2x1
jax: 0.10.0
libtpu: 0.0.40
codegen_flags: <defaults>
</compile_context>

<pallas_src>
import jax
import jax.numpy as jnp
from jax.experimental import pallas as pl
from jax.experimental.pallas import tpu as pltpu


def _round_up(x, m):
    return ((x + m - 1) // m) * m


def _dnet_cat_kernel(xT_ref, w1_ref, w2_ref, w3_ref, b_ref, o_ref):
    xT = xT_ref[...]                      # (cat_dim, TILE_B) f32
    b1 = b_ref[:, 0:1]                    # (N, 1)  lane-broadcast over TILE_B
    b2 = b_ref[:, 1:2]                    # (N, 1)
    b3 = b_ref[0:1, 2:3]                  # (1, 1)

    # ---- lin1 + relu (dropout == identity in eval) ----
    h1 = jnp.dot(w1_ref[...], xT, preferred_element_type=jnp.float32) + b1
    h1 = jnp.maximum(h1, 0.0)             # (N, TILE_B)

    # ---- lin2 + relu ----
    h2 = jnp.dot(w2_ref[...], h1, preferred_element_type=jnp.float32) + b2
    h2 = jnp.maximum(h2, 0.0)             # (N, TILE_B)

    # ---- lin3 on the MXU -> lane-dense (1, TILE_B) row, then sigmoid ----
    logits = jnp.dot(w3_ref[...], h2, preferred_element_type=jnp.float32) + b3
    o_ref[...] = jax.nn.sigmoid(logits)   # unmasked lane-dense store


def d_net_cat_forward(x, params, *, tile_b=2048):
    """x: (B, cat_dim) float32. params: PyTorch-layout dict w1,b1,w2,b2,w3,b3."""
    B, cat_dim = x.shape
    w1 = params["w1"]                     # (N, cat_dim)
    w2 = params["w2"]                     # (N, N)
    N = w1.shape[0]
    w3_row = params["w3"].reshape(1, N)   # (1, N)

    # Fuse the three biases into one small VMEM-resident (N, 3) operand.
    b1_col = params["b1"].reshape(N, 1)
    b2_col = params["b2"].reshape(N, 1)
    b3_col = jnp.pad(params["b3"].reshape(1, 1), ((0, N - 1), (0, 0)))
    bias_pack = jnp.concatenate([b1_col, b2_col, b3_col], axis=1)   # (N, 3)

    # Batch tile: multiple of 128 (lane-dense), capped at tile_b, and sized so
    # realistic batches get >= 2 grid steps (pipeline overlap + megacore).
    tile = min(tile_b, _round_up(max(B // 2, 1), 128))
    b_pad = _round_up(B, tile)
    grid = (b_pad // tile,)

    # Pad the batch, then hand the kernel x^T (cheap XLA transpose of ~40 B/row).
    xT = jnp.pad(x, ((0, b_pad - B), (0, 0))).T          # (cat_dim, b_pad)

    flops = 2 * b_pad * (cat_dim * N + N * N + N)
    bytes_accessed = 4 * (b_pad * cat_dim + b_pad
                          + cat_dim * N + N * N + N + 3 * N)

    out = pl.pallas_call(
        _dnet_cat_kernel,
        out_shape=jax.ShapeDtypeStruct((1, b_pad), jnp.float32),
        grid=grid,
        in_specs=[
            pl.BlockSpec((cat_dim, tile), lambda i: (0, i)),   # x^T: streamed
            pl.BlockSpec((N, cat_dim), lambda i: (0, 0)),      # W1: resident
            pl.BlockSpec((N, N), lambda i: (0, 0)),            # W2: resident
            pl.BlockSpec((1, N), lambda i: (0, 0)),            # W3 row: resident
            pl.BlockSpec((N, 3), lambda i: (0, 0)),            # fused biases
        ],
        out_specs=pl.BlockSpec((1, tile), lambda i: (0, i)),   # lane-dense row
        compiler_params=pltpu.CompilerParams(
            dimension_semantics=("parallel",),
        ),
        cost_estimate=pl.CostEstimate(
            flops=flops,
            transcendentals=2 * b_pad,      # sigmoid = exp + reciprocal
            bytes_accessed=bytes_accessed,
        ),
    )(xT, w1, w2, w3_row, bias_pack)

    return out[0, :B, None]               # back to (B, 1)


def init_params(key, N, cat_dim):
    """nn.Linear-style init: U(-1/sqrt(fan_in), 1/sqrt(fan_in)).
    Weights stored PyTorch-style as (out_features, in_features)."""
    ks = jax.random.split(key, 6)

    def lin(kw, kb, fan_in, fan_out):
        bound = 1.0 / jnp.sqrt(jnp.float32(fan_in))
        w = jax.random.uniform(kw, (fan_out, fan_in), jnp.float32, -bound, bound)
        b = jax.random.uniform(kb, (fan_out,), jnp.float32, -bound, bound)
        return w, b

    w1, b1 = lin(ks[0], ks[1], cat_dim, N)
    w2, b2 = lin(ks[2], ks[3], N, N)
    w3, b3 = lin(ks[4], ks[5], N, 1)
    return {"w1": w1, "b1": b1, "w2": w2, "b2": b2, "w3": w3, "b3": b3}


def _reference(x, p):
    h1 = jax.nn.relu(x @ p["w1"].T + p["b1"])
    h2 = jax.nn.relu(h1 @ p["w2"].T + p["b2"])
    return jax.nn.sigmoid(h2 @ p["w3"].T + p["b3"])


if __name__ == "__main__":
    N = 32          # hidden width
    cat_dim = 10    # categorical code dimension (e.g. 10 MNIST classes)
    batch = 10      # non-multiple of 8/128 -> exercises the padding path

    key = jax.random.PRNGKey(0)
    k_x, k_p = jax.random.split(key)
    x = jax.random.uniform(k_x, (batch, cat_dim), jnp.float32)   # softmax-ish code
    params = init_params(k_p, N, cat_dim)

    out = d_net_cat_forward(x, params)
    out = jax.block_until_ready(out)

    ref = _reference(x, params)
    assert out.shape == (batch, 1), out.shape
    assert jnp.allclose(out, ref, atol=1e-5, rtol=1e-5), (out, ref)

    print("KERNEL_OK")
</pallas_src>

<mosaic_0001>
module attributes {stable_mosaic.version = 11 : i64} {
  func.func @_dnet_cat_kernel(%arg0: i32, %arg1: memref<10x128xf32, #tpu.memory_space<vmem>>, %arg2: memref<32x10xf32, #tpu.memory_space<vmem>>, %arg3: memref<32x32xf32, #tpu.memory_space<vmem>>, %arg4: memref<1x32xf32, #tpu.memory_space<vmem>>, %arg5: memref<32x3xf32, #tpu.memory_space<vmem>>, %arg6: memref<1x128xf32, #tpu.memory_space<vmem>>) attributes {dimension_semantics = [#tpu.dimension_semantics<parallel>], iteration_bounds = array<i64: 1>, scalar_prefetch = 0 : i64, scratch_operands = 0 : i64, tpu.core_type = #tpu.core_type<tc>, window_params = [{transform_indices = @transform_0, window_bounds = array<i64: 10, 128>}, {pipeline_mode = #tpu.pipeline_mode<synchronous>, transform_indices = @transform_1, window_bounds = array<i64: 32, 10>}, {pipeline_mode = #tpu.pipeline_mode<synchronous>, transform_indices = @transform_2, window_bounds = array<i64: 32, 32>}, {pipeline_mode = #tpu.pipeline_mode<synchronous>, transform_indices = @transform_3, window_bounds = array<i64: 1, 32>}, {pipeline_mode = #tpu.pipeline_mode<synchronous>, transform_indices = @transform_4, window_bounds = array<i64: 32, 3>}, {transform_indices = @transform_5, window_bounds = array<i64: 1, 128>}]} {
    %c0 = arith.constant 0 : index
    %c0_0 = arith.constant 0 : index
    %0 = vector.load %arg1[%c0, %c0_0] : memref<10x128xf32, #tpu.memory_space<vmem>>, vector<10x128xf32>
    %c0_1 = arith.constant 0 : index
    %c0_2 = arith.constant 0 : index
    %1 = vector.load %arg5[%c0_1, %c0_2] : memref<32x3xf32, #tpu.memory_space<vmem>>, vector<32x1xf32>
    %c0_3 = arith.constant 0 : index
    %c1 = arith.constant 1 : index
    %2 = vector.load %arg5[%c0_3, %c1] : memref<32x3xf32, #tpu.memory_space<vmem>>, vector<32x1xf32>
    %c0_4 = arith.constant 0 : index
    %c2 = arith.constant 2 : index
    %3 = vector.load %arg5[%c0_4, %c2] : memref<32x3xf32, #tpu.memory_space<vmem>>, vector<1x1xf32>
    %c0_5 = arith.constant 0 : index
    %c0_6 = arith.constant 0 : index
    %4 = vector.load %arg2[%c0_5, %c0_6] : memref<32x10xf32, #tpu.memory_space<vmem>>, vector<32x10xf32>
    %cst = arith.constant dense<0.000000e+00> : vector<32x128xf32>
    %5 = tpu.matmul %4, %0, %cst {dimension_numbers = #tpu.dot_dimension_numbers<[1], [0], [0], [1], [0, 0, 1, 1], [], []>} : vector<32x10xf32>, vector<10x128xf32>, vector<32x128xf32> -> vector<32x128xf32>
    %6 = vector.broadcast %1 : vector<32x1xf32> to vector<32x128xf32>
    %7 = arith.addf %5, %6 : vector<32x128xf32>
    %cst_7 = arith.constant 0.000000e+00 : f32
    %8 = vector.broadcast %cst_7 : f32 to vector<32x128xf32>
    %9 = arith.maximumf %7, %8 : vector<32x128xf32>
    %c0_8 = arith.constant 0 : index
    %c0_9 = arith.constant 0 : index
    %10 = vector.load %arg3[%c0_8, %c0_9] : memref<32x32xf32, #tpu.memory_space<vmem>>, vector<32x32xf32>
    %cst_10 = arith.constant dense<0.000000e+00> : vector<32x128xf32>
    %11 = tpu.matmul %10, %9, %cst_10 {dimension_numbers = #tpu.dot_dimension_numbers<[1], [0], [0], [1], [0, 0, 1, 1], [], []>} : vector<32x32xf32>, vector<32x128xf32>, vector<32x128xf32> -> vector<32x128xf32>
    %12 = vector.broadcast %2 : vector<32x1xf32> to vector<32x128xf32>
    %13 = arith.addf %11, %12 : vector<32x128xf32>
    %cst_11 = arith.constant 0.000000e+00 : f32
    %14 = vector.broadcast %cst_11 : f32 to vector<32x128xf32>
    %15 = arith.maximumf %13, %14 : vector<32x128xf32>
    %c0_12 = arith.constant 0 : index
    %c0_13 = arith.constant 0 : index
    %16 = vector.load %arg4[%c0_12, %c0_13] : memref<1x32xf32, #tpu.memory_space<vmem>>, vector<1x32xf32>
    %cst_14 = arith.constant dense<0.000000e+00> : vector<1x128xf32>
    %17 = tpu.matmul %16, %15, %cst_14 {dimension_numbers = #tpu.dot_dimension_numbers<[1], [0], [0], [1], [0, 0, 1, 1], [], []>} : vector<1x32xf32>, vector<32x128xf32>, vector<1x128xf32> -> vector<1x128xf32>
    %18 = vector.broadcast %3 : vector<1x1xf32> to vector<1x128xf32>
    %19 = arith.addf %17, %18 : vector<1x128xf32>
    %20 = arith.negf %19 : vector<1x128xf32>
    %21 = math.exp %20 : vector<1x128xf32>
    %cst_15 = arith.constant 1.000000e+00 : f32
    %22 = vector.broadcast %cst_15 : f32 to vector<1x128xf32>
    %23 = arith.addf %22, %21 : vector<1x128xf32>
    %24 = arith.divf %22, %23 : vector<1x128xf32>
    %c0_16 = arith.constant 0 : index
    %c0_17 = arith.constant 0 : index
    %25 = vector.load %arg6[%c0_16, %c0_17] : memref<1x128xf32, #tpu.memory_space<vmem>>, vector<1x128xf32>
    tpu.vector_store %arg6[%c0_16, %c0_17], %24 {strides = array<i32>} : memref<1x128xf32, #tpu.memory_space<vmem>>, vector<1x128xf32>,
    return
  }
  func.func @transform_0(%arg0: i32) -> (i32, i32) {
    %c0_i32 = arith.constant 0 : i32
    %c0_i32_0 = arith.constant 0 : i32
    return %c0_i32, %arg0 : i32, i32
  }
  func.func @transform_1(%arg0: i32) -> (i32, i32) {
    %c0_i32 = arith.constant 0 : i32
    %c0_i32_0 = arith.constant 0 : i32
    %c0_i32_1 = arith.constant 0 : i32
    return %c0_i32, %c0_i32_0 : i32, i32
  }
  func.func @transform_2(%arg0: i32) -> (i32, i32) {
    %c0_i32 = arith.constant 0 : i32
    %c0_i32_0 = arith.constant 0 : i32
    %c0_i32_1 = arith.constant 0 : i32
    return %c0_i32, %c0_i32_0 : i32, i32
  }
  func.func @transform_3(%arg0: i32) -> (i32, i32) {
    %c0_i32 = arith.constant 0 : i32
    %c0_i32_0 = arith.constant 0 : i32
    %c0_i32_1 = arith.constant 0 : i32
    return %c0_i32, %c0_i32_0 : i32, i32
  }
  func.func @transform_4(%arg0: i32) -> (i32, i32) {
    %c0_i32 = arith.constant 0 : i32
    %c0_i32_0 = arith.constant 0 : i32
    %c0_i32_1 = arith.constant 0 : i32
    return %c0_i32, %c0_i32_0 : i32, i32
  }
  func.func @transform_5(%arg0: i32) -> (i32, i32) {
    %c0_i32 = arith.constant 0 : i32
    %c0_i32_0 = arith.constant 0 : i32
    return %c0_i32, %arg0 : i32, i32
  }
}

</mosaic_0001>

<llo_original>
// kernel: tpu_custom_call.1
$region0: #{tpu_custom_call.1}
  #allocation0 [shape = 'u32[]', space=smem, size = 0x4, offset = 0x4, fixed_abs, tag = 'smem constant byte address 0x4 - core index']
  #allocation1 [shape = 'u32[144,128]{1,0:T(1,128)}', space=vmem, size = 0x12000, scoped, tag = 'internal scratch']
  %s0 = inlined_call_operand.vmem [shape: f32[10,128], index: 0, kind: input, shape index: {}]
  %s1 = inlined_call_operand.vmem [shape: f32[32,10], index: 1, kind: input, shape index: {}]
  %s2 = inlined_call_operand.vmem [shape: f32[32,32], index: 2, kind: input, shape index: {}]
  %s3 = inlined_call_operand.vmem [shape: f32[1,32], index: 3, kind: input, shape index: {}]
  %s4 = inlined_call_operand.vmem [shape: f32[32,3], index: 4, kind: input, shape index: {}]
  %s5 = inlined_call_operand.hbm [shape: f32[1,128], index: 5, kind: output, shape index: {}]
  %s6 = sld [smem:[#allocation0]]
  $region30: #{tpu_custom_call.1} parent=0
    _
  %s8 = ssub.s32 1, %s6
  %s9 = scalar_select 0, %s8, %s6
  $region1: #{tpu_custom_call.1} parent=0
    #allocation2 [shape = 'u8[512]{0}', space=vmem, size = 0x400, scoped, tag = 'output window, operand 0, single buffered']
    #allocation3 [shape = 's32[1]{0}', space=sflag, size = 0x4, scoped, tag = 'scoped memory for tpu_custom_call.1']
    %10 = vsyncpa [#allocation3], 0
    // Predicated region
    $region2: #{tpu_custom_call.1} parent=1 // pred_check
      _
    $region3: #{tpu_custom_call.1} parent=1 // pred_check_branch
      %12 = sbr.rel (0) target = $region5
    $region4: #{tpu_custom_call.1} parent=1 // pred_region
      _
    $region5: #{tpu_custom_call.1} parent=1 // pred_fallthru
      _
    // Predicated region
    $region6: #{tpu_custom_call.1} parent=1 // pred_check
      _
    $region7: #{tpu_custom_call.1} parent=1 // pred_check_branch
      %14 = sbr.rel (0) target = $region9
    $region8: #{tpu_custom_call.1} parent=1 // pred_region
      _
    $region9: #{tpu_custom_call.1} parent=1 // pred_fallthru
      _
    // Predicated region
    $region10: #{tpu_custom_call.1} parent=1 // pred_check
      _
    $region11: #{tpu_custom_call.1} parent=1 // pred_check_branch
      %16 = sbr.rel (0) target = $region13
    $region12: #{tpu_custom_call.1} parent=1 // pred_region
      _
    $region13: #{tpu_custom_call.1} parent=1 // pred_fallthru
      _
    // Predicated region
    $region14: #{tpu_custom_call.1} parent=1 // pred_check
      _
    $region15: #{tpu_custom_call.1} parent=1 // pred_check_branch
      %18 = sbr.rel (0) target = $region17
    $region16: #{tpu_custom_call.1} parent=1 // pred_region
      _
    $region17: #{tpu_custom_call.1} parent=1 // pred_fallthru
      _
    // Predicated region
    $region18: #{tpu_custom_call.1} parent=1 // pred_check
      _
    $region19: #{tpu_custom_call.1} parent=1 // pred_check_branch
      %20 = sbr.rel (0) target = $region21
    $region20: #{tpu_custom_call.1} parent=1 // pred_region
      _
    $region21: #{tpu_custom_call.1} parent=1 // pred_fallthru
      _
    %v21 = vld [vmem:[%s0] sm:$0xff]
    %v22 = vld [vmem:[%s0 + $0x8] sm:$0x3]
    %v23 = vld [vmem:[%s4] sm:$0xff]
    %v24 = vld [vmem:[%s4 + $0x8] sm:$0xff]
    %v25 = vld [vmem:[%s4 + $0x10] sm:$0xff]
    %v26 = vld [vmem:[%s4 + $0x18] sm:$0xff]
    %v27 = vld [vmem:[%s4] sm:$0x1]
    %v28 = vld [vmem:[%s1] sm:$0xff]
    %v29 = vld [vmem:[%s1 + $0x8] sm:$0xff]
    %v30 = vld [vmem:[%s1 + $0x10] sm:$0xff]
    %v31 = vld [vmem:[%s1 + $0x18] sm:$0xff]
    %33 = vset.pattern.permute.xlu0 0
    %34 = vperm.xlu0 %33, %v23
    %v35 = vpop.permute.xlu0 %34
    %38 = vset.pattern.permute.xlu0 0
    %39 = vperm.xlu0 %38, %v24
    %v40 = vpop.permute.xlu0 %39
    %43 = vset.pattern.permute.xlu0 0
    %44 = vperm.xlu0 %43, %v25
    %v45 = vpop.permute.xlu0 %44
    %48 = vset.pattern.permute.xlu0 0
    %49 = vperm.xlu0 %48, %v26
    %v50 = vpop.permute.xlu0 %49
    %vm52 = vcmask 80896
    %v54 = vsel %vm52, %v28, 0
    %v57 = vsel %vm52, %v29, 0
    %v60 = vsel %vm52, %v30, 0
    %v63 = vsel %vm52, %v31, 0
    %vm65 = vcmask 1041408
    %v67 = vsel %vm65, %v22, 0
    %69 = vmatprep.subr.mxu0 0.0
    %70 = vmatpush1.msra.mxu0 %v21
    %71 = vmatprep.subr.mxu0 0.0
    %72 = vmatpush1.msra.mxu0 %v67
    %73 = vmatprep.subr.mxu0 0.0
    %74 = vmatpush1.msra.mxu0 0.0
    %75 = vmatprep.subr.mxu0 0.0
    %76 = vmatpush1.msra.mxu0 0.0
    %77 = vmatprep.subr.mxu0 0.0
    %78 = vmatpush1.msra.mxu0 0.0
    %79 = vmatprep.subr.mxu0 0.0
    %80 = vmatpush1.msra.mxu0 0.0
    %81 = vmatprep.subr.mxu0 0.0
    %82 = vmatpush1.msra.mxu0 0.0
    %83 = vmatprep.subr.mxu0 0.0
    %84 = vmatpush1.msra.mxu0 0.0
    %85 = vmatprep.subr.mxu0 0.0
    %86 = vmatpush1.msra.mxu0 0.0
    %87 = vmatprep.subr.mxu0 0.0
    %88 = vmatpush1.msra.mxu0 0.0
    %89 = vmatprep.subr.mxu0 0.0
    %90 = vmatpush1.msra.mxu0 0.0
    %91 = vmatprep.subr.mxu0 0.0
    %92 = vmatpush1.msra.mxu0 0.0
    %93 = vmatprep.subr.mxu0 0.0
    %94 = vmatpush1.msra.mxu0 0.0
    %95 = vmatprep.subr.mxu0 0.0
    %96 = vmatpush1.msra.mxu0 0.0
    %97 = vmatprep.subr.mxu0 0.0
    %98 = vmatpush1.msra.mxu0 0.0
    %99 = vmatprep.subr.mxu0 0.0
    %100 = vmatpush1.msra.mxu0 0.0
    %101 = vmatprep.subr.mxu0 0.0
    %102 = vmatpush1.msra.mxu0 0.0
    %103 = vmatprep.subr.mxu0 0.0
    %104 = vmatpush1.msra.mxu0 0.0
    %105 = vmatprep.subr.mxu0 0.0
    %106 = vmatpush1.msra.mxu0 0.0
    %107 = vmatprep.subr.mxu0 0.0
    %108 = vmatpush1.msra.mxu0 0.0
    %109 = vmatprep.subr.mxu0 0.0
    %110 = vmatpush1.msra.mxu0 0.0
    %111 = vmatprep.subr.mxu0 0.0
    %112 = vmatpush1.msra.mxu0 0.0
    %113 = vmatprep.subr.mxu0 0.0
    %114 = vmatpush1.msra.mxu0 0.0
    %115 = vmatprep.subr.mxu0 0.0
    %116 = vmatpush1.msra.mxu0 0.0
    %117 = vmatprep.subr.mxu0 0.0
    %118 = vmatpush1.msra.mxu0 0.0
    %119 = vmatprep.subr.mxu0 0.0
    %120 = vmatpush1.msra.mxu0 0.0
    %121 = vmatprep.subr.mxu0 0.0
    %122 = vmatpush1.msra.mxu0 0.0
    %123 = vmatprep.subr.mxu0 0.0
    %124 = vmatpush1.msra.mxu0 0.0
    %125 = vmatprep.subr.mxu0 0.0
    %126 = vmatpush1.msra.mxu0 0.0
    %127 = vmatprep.subr.mxu0 0.0
    %128 = vmatpush1.msra.mxu0 0.0
    %129 = vmatprep.subr.mxu0 0.0
    %130 = vmatpush1.msra.mxu0 0.0
    %131 = vmatprep.subr.mxu0 0.0
    %132 = vmatpush1.msra.mxu0 0.0
    %133 = vmatprep.mubr.f32.mxu0 0.0
    %134 = vmatmul.mubr.f32.gmra.mrb[0].mxu0 %v54
    %v135 = vpop.f32.mrb[0].mxu0
    %v136 = vadd.f32 %v35, %v135
    %v137 = vpop.f32.mrb[0].mxu0
    %138 = vmatprep.mubr.f32.mxu0 0.0
    %139 = vmatmul.mubr.f32.gmra.mrb[0].mxu0 %v57
    %v140 = vpop.f32.mrb[0].mxu0
    %v141 = vadd.f32 %v40, %v140
    %v142 = vpop.f32.mrb[0].mxu0
    %143 = vmatprep.mubr.f32.mxu0 0.0
    %144 = vmatmul.mubr.f32.gmra.mrb[0].mxu0 %v60
    %v145 = vpop.f32.mrb[0].mxu0
    %v146 = vadd.f32 %v45, %v145
    %v147 = vpop.f32.mrb[0].mxu0
    %148 = vmatprep.mubr.f32.mxu0 0.0
    %149 = vmatmul.mubr.f32.gmra.mrb[0].mxu0 %v63
    %v150 = vpop.f32.mrb[0].mxu0
    %v151 = vadd.f32 %v50, %v150
    %v152 = vpop.f32.mrb[0].mxu0
    %153 = vdwg.mxu0
    %v154 = vmax.f32 %v136, 0.0
    %v155 = vmax.f32 %v141, 0.0
    %v156 = vmax.f32 %v146, 0.0
    %v157 = vmax.f32 %v151, 0.0
    %v158 = vld [vmem:[%s2] sm:$0xff]
    %v159 = vld [vmem:[%s2 + $0x8] sm:$0xff]
    %v160 = vld [vmem:[%s2 + $0x10] sm:$0xff]
    %v161 = vld [vmem:[%s2 + $0x18] sm:$0xff]
    %162 = vset.pattern.permute.xlu0 1
    %163 = vperm.xlu0 %162, %v23
    %v164 = vpop.permute.xlu0 %163
    %166 = vset.pattern.permute.xlu0 1
    %167 = vperm.xlu0 %166, %v24
    %v168 = vpop.permute.xlu0 %167
    %170 = vset.pattern.permute.xlu0 1
    %171 = vperm.xlu0 %170, %v25
    %v172 = vpop.permute.xlu0 %171
    %174 = vset.pattern.permute.xlu0 1
    %175 = vperm.xlu0 %174, %v26
    %v176 = vpop.permute.xlu0 %175
    %vm178 = vcmask 261120
    %v180 = vsel %vm178, %v158, 0
    %v183 = vsel %vm178, %v159, 0
    %v186 = vsel %vm178, %v160, 0
    %v189 = vsel %vm178, %v161, 0
    %191 = vmatprep.subr.mxu0 0.0
    %192 = vmatpush1.msra.mxu0 %v154
    %193 = vmatprep.subr.mxu0 0.0
    %194 = vmatpush1.msra.mxu0 %v155
    %195 = vmatprep.subr.mxu0 0.0
    %196 = vmatpush1.msra.mxu0 %v156
    %197 = vmatprep.subr.mxu0 0.0
    %198 = vmatpush1.msra.mxu0 %v157
    %199 = vmatprep.subr.mxu0 0.0
    %200 = vmatpush1.msra.mxu0 0.0
    %201 = vmatprep.subr.mxu0 0.0
    %202 = vmatpush1.msra.mxu0 0.0
    %203 = vmatprep.subr.mxu0 0.0
    %204 = vmatpush1.msra.mxu0 0.0
    %205 = vmatprep.subr.mxu0 0.0
    %206 = vmatpush1.msra.mxu0 0.0
    %207 = vmatprep.subr.mxu0 0.0
    %208 = vmatpush1.msra.mxu0 0.0
    %209 = vmatprep.subr.mxu0 0.0
    %210 = vmatpush1.msra.mxu0 0.0
    %211 = vmatprep.subr.mxu0 0.0
    %212 = vmatpush1.msra.mxu0 0.0
    %213 = vmatprep.subr.mxu0 0.0
    %214 = vmatpush1.msra.mxu0 0.0
    %215 = vmatprep.subr.mxu0 0.0
    %216 = vmatpush1.msra.mxu0 0.0
    %217 = vmatprep.subr.mxu0 0.0
    %218 = vmatpush1.msra.mxu0 0.0
    %219 = vmatprep.subr.mxu0 0.0
    %220 = vmatpush1.msra.mxu0 0.0
    %221 = vmatprep.subr.mxu0 0.0
    %222 = vmatpush1.msra.mxu0 0.0
    %223 = vmatprep.subr.mxu0 0.0
    %224 = vmatpush1.msra.mxu0 0.0
    %225 = vmatprep.subr.mxu0 0.0
    %226 = vmatpush1.msra.mxu0 0.0
    %227 = vmatprep.subr.mxu0 0.0
    %228 = vmatpush1.msra.mxu0 0.0
    %229 = vmatprep.subr.mxu0 0.0
    %230 = vmatpush1.msra.mxu0 0.0
    %231 = vmatprep.subr.mxu0 0.0
    %232 = vmatpush1.msra.mxu0 0.0
    %233 = vmatprep.subr.mxu0 0.0
    %234 = vmatpush1.msra.mxu0 0.0
    %235 = vmatprep.subr.mxu0 0.0
    %236 = vmatpush1.msra.mxu0 0.0
    %237 = vmatprep.subr.mxu0 0.0
    %238 = vmatpush1.msra.mxu0 0.0
    %239 = vmatprep.subr.mxu0 0.0
    %240 = vmatpush1.msra.mxu0 0.0
    %241 = vmatprep.subr.mxu0 0.0
    %242 = vmatpush1.msra.mxu0 0.0
    %243 = vmatprep.subr.mxu0 0.0
    %244 = vmatpush1.msra.mxu0 0.0
    %245 = vmatprep.subr.mxu0 0.0
    %246 = vmatpush1.msra.mxu0 0.0
    %247 = vmatprep.subr.mxu0 0.0
    %248 = vmatpush1.msra.mxu0 0.0
    %249 = vmatprep.subr.mxu0 0.0
    %250 = vmatpush1.msra.mxu0 0.0
    %251 = vmatprep.subr.mxu0 0.0
    %252 = vmatpush1.msra.mxu0 0.0
    %253 = vmatprep.subr.mxu0 0.0
    %254 = vmatpush1.msra.mxu0 0.0
    %255 = vmatprep.mubr.f32.mxu0 0.0
    %256 = vmatmul.mubr.f32.gmra.mrb[0].mxu0 %v180
    %v257 = vpop.f32.mrb[0].mxu0
    %v258 = vadd.f32 %v164, %v257
    %v259 = vpop.f32.mrb[0].mxu0
    %260 = vmatprep.mubr.f32.mxu0 0.0
    %261 = vmatmul.mubr.f32.gmra.mrb[0].mxu0 %v183
    %v262 = vpop.f32.mrb[0].mxu0
    %v263 = vadd.f32 %v168, %v262
    %v264 = vpop.f32.mrb[0].mxu0
    %265 = vmatprep.mubr.f32.mxu0 0.0
    %266 = vmatmul.mubr.f32.gmra.mrb[0].mxu0 %v186
    %v267 = vpop.f32.mrb[0].mxu0
    %v268 = vadd.f32 %v172, %v267
    %v269 = vpop.f32.mrb[0].mxu0
    %270 = vmatprep.mubr.f32.mxu0 0.0
    %271 = vmatmul.mubr.f32.gmra.mrb[0].mxu0 %v189
    %v272 = vpop.f32.mrb[0].mxu0
    %v273 = vadd.f32 %v176, %v272
    %v274 = vpop.f32.mrb[0].mxu0
    %275 = vdwg.mxu0
    %v276 = vmax.f32 %v258, 0.0
    %v277 = vmax.f32 %v263, 0.0
    %v278 = vmax.f32 %v268, 0.0
    %v279 = vmax.f32 %v273, 0.0
    %v280 = vld [vmem:[%s3] sm:$0x1]
    %282 = vset.pattern.permute.xlu0 2
    %283 = vperm.xlu0 %282, %v27
    %v284 = vpop.permute.xlu0 %283
    %v287 = vsel %vm178, %v280, 0
    %289 = vmatprep.subr.mxu0 0.0
    %290 = vmatpush1.msra.mxu0 %v276
    %291 = vmatprep.subr.mxu0 0.0
    %292 = vmatpush1.msra.mxu0 %v277
    %293 = vmatprep.subr.mxu0 0.0
    %294 = vmatpush1.msra.mxu0 %v278
    %295 = vmatprep.subr.mxu0 0.0
    %296 = vmatpush1.msra.mxu0 %v279
    %297 = vmatprep.subr.mxu0 0.0
    %298 = vmatpush1.msra.mxu0 0.0
    %299 = vmatprep.subr.mxu0 0.0
    %300 = vmatpush1.msra.mxu0 0.0
    %301 = vmatprep.subr.mxu0 0.0
    %302 = vmatpush1.msra.mxu0 0.0
    %303 = vmatprep.subr.mxu0 0.0
    %304 = vmatpush1.msra.mxu0 0.0
    %305 = vmatprep.subr.mxu0 0.0
    %306 = vmatpush1.msra.mxu0 0.0
    %307 = vmatprep.subr.mxu0 0.0
    %308 = vmatpush1.msra.mxu0 0.0
    %309 = vmatprep.subr.mxu0 0.0
    %310 = vmatpush1.msra.mxu0 0.0
    %311 = vmatprep.subr.mxu0 0.0
    %312 = vmatpush1.msra.mxu0 0.0
    %313 = vmatprep.subr.mxu0 0.0
    %314 = vmatpush1.msra.mxu0 0.0
    %315 = vmatprep.subr.mxu0 0.0
    %316 = vmatpush1.msra.mxu0 0.0
    %317 = vmatprep.subr.mxu0 0.0
    %318 = vmatpush1.msra.mxu0 0.0
    %319 = vmatprep.subr.mxu0 0.0
    %320 = vmatpush1.msra.mxu0 0.0
    %321 = vmatprep.subr.mxu0 0.0
    %322 = vmatpush1.msra.mxu0 0.0
    %323 = vmatprep.subr.mxu0 0.0
    %324 = vmatpush1.msra.mxu0 0.0
    %325 = vmatprep.subr.mxu0 0.0
    %326 = vmatpush1.msra.mxu0 0.0
    %327 = vmatprep.subr.mxu0 0.0
    %328 = vmatpush1.msra.mxu0 0.0
    %329 = vmatprep.subr.mxu0 0.0
    %330 = vmatpush1.msra.mxu0 0.0
    %331 = vmatprep.subr.mxu0 0.0
    %332 = vmatpush1.msra.mxu0 0.0
    %333 = vmatprep.subr.mxu0 0.0
    %334 = vmatpush1.msra.mxu0 0.0
    %335 = vmatprep.subr.mxu0 0.0
    %336 = vmatpush1.msra.mxu0 0.0
    %337 = vmatprep.subr.mxu0 0.0
    %338 = vmatpush1.msra.mxu0 0.0
    %339 = vmatprep.subr.mxu0 0.0
    %340 = vmatpush1.msra.mxu0 0.0
    %341 = vmatprep.subr.mxu0 0.0
    %342 = vmatpush1.msra.mxu0 0.0
    %343 = vmatprep.subr.mxu0 0.0
    %344 = vmatpush1.msra.mxu0 0.0
    %345 = vmatprep.subr.mxu0 0.0
    %346 = vmatpush1.msra.mxu0 0.0
    %347 = vmatprep.subr.mxu0 0.0
    %348 = vmatpush1.msra.mxu0 0.0
    %349 = vmatprep.subr.mxu0 0.0
    %350 = vmatpush1.msra.mxu0 0.0
    %351 = vmatprep.subr.mxu0 0.0
    %352 = vmatpush1.msra.mxu0 0.0
    %353 = vmatprep.mubr.f32.mxu0 0.0
    %354 = vmatmul.mubr.f32.gmra.mrb[0].mxu0 %v287
    %v355 = vpop.f32.mrb[0].mxu0
    %v356 = vadd.f32 %v284, %v355
    %v357 = vpop.f32.mrb[0].mxu0
    %358 = vdwg.mxu0
    %v359 = vxor.u32 %v356, 2147483648
    %v360 = vmul.f32 %v359, 1.442695
    %v361 = vpow.pop %v360
    %v362 = vadd.f32 %v361, 1.0
    %v363 = vrcp.pop %v362
    %v364 = vmul.f32 1.0, %v363
    %365 = vst [vmem:[#allocation2] sm:$0x1] %v364
    // Predicated region
    $region22: #{tpu_custom_call.1} parent=1 // pred_check
      _
    $region23: #{tpu_custom_call.1} parent=1 // pred_check_branch
      %367 = sbr.rel (0) target = $region25
    $region24: #{tpu_custom_call.1} parent=1 // pred_region
      %s369 = ssub.s32 16, 16
      %370 = vsyncadd [#allocation3], %s369
      %s372 = sshll.u32 [#allocation2], 4
      %s373 = int_to_ptr.vmem [resolvable:$true] %s372
      %375 = dma.vmem_to_hbm [thread:$0]  %s373, 16, %s5, [#allocation3]
    $region25: #{tpu_custom_call.1} parent=1 // pred_fallthru
      _
    // Predicated region
    $region26: #{tpu_custom_call.1} parent=1 // pred_check
      _
    $region27: #{tpu_custom_call.1} parent=1 // pred_check_branch
      %377 = sbr.rel (0) target = $region29
    $region28: #{tpu_custom_call.1} parent=1 // pred_region
      %378 = dma.done [#allocation3], 16
    $region29: #{tpu_custom_call.1} parent=1 // pred_fallthru
      _
    %379 = vsyncpa [#allocation3], 1

</llo_original>
